<compile_context>
chip_gen: v7x
topology: tpu7x:2x2x1
jax: 0.10.0
libtpu: 0.0.40
codegen_flags: <defaults>
</compile_context>

<pallas_src>
import math

import jax
import jax.numpy as jnp
from jax import lax
from jax.experimental import pallas as pl
from jax.experimental.pallas import tpu as pltpu


# ----------------------------- tiling helpers --------------------------------


def _round_up(x, m):
    return ((x + m - 1) // m) * m


def _pad2(a, rows, cols):
    r, c = a.shape
    if r == rows and c == cols:
        return a
    return jnp.pad(a, ((0, rows - r), (0, cols - c)))


def _largest_tile(size, cap):
    """Largest multiple of 128 that divides `size` (size % 128 == 0) and is <= cap."""
    best = 128
    t = 128
    while t <= min(cap, size):
        if size % t == 0:
            best = t
        t += 128
    return best


def _pick_weight_tiles(out_feat, in_feat):
    """(tn, tk, Np, Kp): layer-dependent tiles, chosen once per layer."""
    Np = _round_up(out_feat, 128)
    Kp = _round_up(in_feat, 128)
    # K tile: as large as possible (<=1024) while dividing Kp -> big weight DMAs
    # that amortize the ~0.35us/grid-step overhead (weight stream is the roofline).
    tk = _largest_tile(Kp, 1024)
    # N tile: <=512; if one tile would cover all of N and N allows it, halve it so
    # the "parallel" j axis has >=2 blocks (keeps both v7x TensorCores busy even
    # when the batch fits a single i-block).
    tn = _largest_tile(Np, 512)
    if tn == Np and Np >= 256:
        tn = _largest_tile(Np, Np // 2)
    return tn, tk, Np, Kp


def _pick_tm(batch, tm_max=512):
    """Row tile that minimizes M padding waste (equal-ish blocks <= tm_max)."""
    nblocks = -(-batch // tm_max)               # ceil
    return _round_up(-(-batch // nblocks), 8)   # ceil(batch/nblocks) rounded to 8


# ----------------------------- kernels ---------------------------------------


def _noisy_linear_fact_kernel(x_ref, wmu_ref, wsig_ref, eps_out_ref, eps_in_ref,
                              beff_ref, o_ref):
    """Default path: rank-1 (factorized) noise, bf16/f32 operands, f32 accumulate.

    Output tile (i, j) is resident across the k axis, so we accumulate directly
    into o_ref (f32) - no scratch accumulator, no finalize copy.
    """
    k = pl.program_id(2)

    @pl.when(k == 0)
    def _():
        o_ref[...] = jnp.zeros_like(o_ref)

    # (tn,1) * (1,tk) -> (tn,tk) rank-1 noise; VPU only, no full eps matrix DMA.
    w_eff = wmu_ref[...] + wsig_ref[...] * (eps_out_ref[...] * eps_in_ref[...])
    # Contract x dim 1 with w_eff dim 1 (i.e. x @ W.T): MXU-direct, no transpose.
    o_ref[...] += lax.dot_general(
        x_ref[...], w_eff,
        dimension_numbers=(((1,), (1,)), ((), ())),
        preferred_element_type=jnp.float32)

    @pl.when(k == pl.num_programs(2) - 1)
    def _():
        o_ref[...] += beff_ref[...]          # pre-fused bias, single (1, tn) stream


def _noisy_linear_full_kernel(x_ref, wmu_ref, wsig_ref, weps_ref, beff_ref, o_ref):
    """Compatibility fallback: streams the full (out, in) weight_epsilon buffer."""
    k = pl.program_id(2)

    @pl.when(k == 0)
    def _():
        o_ref[...] = jnp.zeros_like(o_ref)

    w_eff = wmu_ref[...] + wsig_ref[...] * weps_ref[...]
    o_ref[...] += lax.dot_general(
        x_ref[...], w_eff,
        dimension_numbers=(((1,), (1,)), ((), ())),
        preferred_element_type=jnp.float32)

    @pl.when(k == pl.num_programs(2) - 1)
    def _():
        o_ref[...] += beff_ref[...]


# ----------------------------- wrappers ---------------------------------------


def _specs(tm, tn, tk):
    x_spec = pl.BlockSpec((tm, tk), lambda i, j, k: (i, k))
    w_spec = pl.BlockSpec((tn, tk), lambda i, j, k: (j, k))
    b_spec = pl.BlockSpec((1, tn), lambda i, j, k: (0, j))
    o_spec = pl.BlockSpec((tm, tn), lambda i, j, k: (i, j))
    return x_spec, w_spec, b_spec, o_spec


def prepare_noisy_layer(params, *, weight_dtype=jnp.bfloat16):
    """Pad / cast weights & fuse bias ONCE (at init or reset_noise time).

    The hot-path `noisy_layer_forward` then only pads/casts x.  Assumes
    weight_epsilon == outer(eps_out, eps_in) (standard NoisyNet reset_noise).
    Use weight_dtype=jnp.float32 for exact f32 parity (or on v5e if the bf16
    noise reconstruction binds on the VPU).
    """
    out_feat, in_feat = params["weight_mu"].shape
    tn, tk, Np, Kp = _pick_weight_tiles(out_feat, in_feat)

    wmu = _pad2(params["weight_mu"], Np, Kp).astype(weight_dtype)
    wsig = _pad2(params["weight_sigma"], Np, Kp).astype(weight_dtype)
    e_out = _pad2(params["eps_out"].reshape(out_feat, 1), Np, 1).astype(weight_dtype)
    e_in = _pad2(params["eps_in"].reshape(1, in_feat), 1, Kp).astype(weight_dtype)
    # Bias fused once per noise resample; kept in f32 (added to the f32 accumulator).
    b_eff = params["bias_mu"] + params["bias_sigma"] * params["bias_epsilon"]
    b_eff = _pad2(b_eff.reshape(1, out_feat), 1, Np).astype(jnp.float32)

    return dict(wmu=wmu, wsig=wsig, eps_out=e_out, eps_in=e_in, b_eff=b_eff,
                out_feat=out_feat, in_feat=in_feat,
                tn=tn, tk=tk, Np=Np, Kp=Kp, weight_dtype=weight_dtype)


def noisy_layer_forward(x, prep):
    """Fast path: y = x @ (W_mu + W_sigma * outer(eps_out, eps_in)).T + b_eff."""
    B, in_feat = x.shape
    assert in_feat == prep["in_feat"], "input feature mismatch"
    out_feat = prep["out_feat"]
    tn, tk, Np, Kp = prep["tn"], prep["tk"], prep["Np"], prep["Kp"]
    tm = _pick_tm(B)
    Mp = _round_up(B, tm)

    xp = _pad2(x, Mp, Kp).astype(prep["weight_dtype"])   # only hot-path padding

    x_spec, w_spec, b_spec, o_spec = _specs(tm, tn, tk)
    eps_out_spec = pl.BlockSpec((tn, 1), lambda i, j, k: (j, 0))
    eps_in_spec = pl.BlockSpec((1, tk), lambda i, j, k: (0, k))

    out = pl.pallas_call(
        _noisy_linear_fact_kernel,
        out_shape=jax.ShapeDtypeStruct((Mp, Np), jnp.float32),
        grid_spec=pltpu.PrefetchScalarGridSpec(
            num_scalar_prefetch=0,
            grid=(Mp // tm, Np // tn, Kp // tk),
            in_specs=[x_spec, w_spec, w_spec, eps_out_spec, eps_in_spec, b_spec],
            out_specs=o_spec,
        ),
        compiler_params=pltpu.CompilerParams(
            dimension_semantics=("parallel", "parallel", "arbitrary")),
    )(xp, prep["wmu"], prep["wsig"], prep["eps_out"], prep["eps_in"], prep["b_eff"])
    return out[:B, :out_feat]


def noisy_layer_forward_full(x, weight_mu, weight_sigma, weight_epsilon,
                             bias_mu, bias_sigma, bias_epsilon):
    """Compatibility fallback matching the module's registered buffers exactly
    (f32, full weight_epsilon).  Prefer prepare_noisy_layer + noisy_layer_forward."""
    B, in_feat = x.shape
    out_feat, _ = weight_mu.shape
    tn, tk, Np, Kp = _pick_weight_tiles(out_feat, in_feat)
    tm = _pick_tm(B)
    Mp = _round_up(B, tm)

    xp = _pad2(x, Mp, Kp)
    wmu = _pad2(weight_mu, Np, Kp)
    wsig = _pad2(weight_sigma, Np, Kp)
    weps = _pad2(weight_epsilon, Np, Kp)
    b_eff = bias_mu + bias_sigma * bias_epsilon
    b_eff = _pad2(b_eff.reshape(1, out_feat), 1, Np).astype(jnp.float32)

    x_spec, w_spec, b_spec, o_spec = _specs(tm, tn, tk)

    out = pl.pallas_call(
        _noisy_linear_full_kernel,
        out_shape=jax.ShapeDtypeStruct((Mp, Np), jnp.float32),
        grid_spec=pltpu.PrefetchScalarGridSpec(
            num_scalar_prefetch=0,
            grid=(Mp // tm, Np // tn, Kp // tk),
            in_specs=[x_spec, w_spec, w_spec, w_spec, b_spec],
            out_specs=o_spec,
        ),
        compiler_params=pltpu.CompilerParams(
            dimension_semantics=("parallel", "parallel", "arbitrary")),
    )(xp, wmu, wsig, weps, b_eff)
    return out[:B, :out_feat]


# ----------------------------- init helpers ----------------------------------


def _scale_noise(key, size):
    # Factorized Gaussian noise: sign(x) * sqrt(|x|)
    x = jax.random.normal(key, (size,), dtype=jnp.float32)
    return jnp.sign(x) * jnp.sqrt(jnp.abs(x))


def make_noisy_layer_params(key, in_feat, out_feat, init_std=0.4):
    """Mirrors reset_parameters() / reset_noise() of the PyTorch module."""
    k_wmu, k_bmu, k_ein, k_eout = jax.random.split(key, 4)
    mu_range = 1.0 / math.sqrt(in_feat)

    weight_mu = jax.random.uniform(
        k_wmu, (out_feat, in_feat), jnp.float32, -mu_range, mu_range)
    weight_sigma = jnp.full((out_feat, in_feat),
                            init_std / math.sqrt(in_feat), jnp.float32)
    bias_mu = jax.random.uniform(
        k_bmu, (out_feat,), jnp.float32, -mu_range, mu_range)
    bias_sigma = jnp.full((out_feat,),
                          init_std / math.sqrt(out_feat), jnp.float32)

    eps_in = _scale_noise(k_ein, in_feat)
    eps_out = _scale_noise(k_eout, out_feat)
    weight_epsilon = jnp.outer(eps_out, eps_in)          # eps_out.ger(eps_in)
    bias_epsilon = eps_out

    return dict(weight_mu=weight_mu, weight_sigma=weight_sigma,
                weight_epsilon=weight_epsilon, bias_mu=bias_mu,
                bias_sigma=bias_sigma, bias_epsilon=bias_epsilon,
                eps_in=eps_in, eps_out=eps_out)


if __name__ == "__main__":
    key = jax.random.PRNGKey(0)
    k_params, k_x = jax.random.split(key)

    B, IN_FEAT, OUT_FEAT = 8, 32, 16
    params = make_noisy_layer_params(k_params, IN_FEAT, OUT_FEAT)
    x = jax.random.normal(k_x, (B, IN_FEAT), dtype=jnp.float32)

    # Default fast path: factorized noise, bf16 weights / MXU, f32 accumulation.
    prep_bf16 = prepare_noisy_layer(params, weight_dtype=jnp.bfloat16)
    y_fast = noisy_layer_forward(x, prep_bf16)

    # f32 parity path (same factorized kernel, f32 operands).
    prep_f32 = prepare_noisy_layer(params, weight_dtype=jnp.float32)
    y_f32 = noisy_layer_forward(x, prep_f32)

    # Compatibility fallback that streams the module's full weight_epsilon buffer.
    y_full = noisy_layer_forward_full(
        x,
        params["weight_mu"], params["weight_sigma"], params["weight_epsilon"],
        params["bias_mu"], params["bias_sigma"], params["bias_epsilon"])

    jax.block_until_ready((y_fast, y_f32, y_full))

    # Pure-JAX reference (same math as the PyTorch forward).
    w_eff = params["weight_mu"] + params["weight_sigma"] * params["weight_epsilon"]
    b_eff = params["bias_mu"] + params["bias_sigma"] * params["bias_epsilon"]
    y_ref = x @ w_eff.T + b_eff

    assert y_fast.shape == (B, OUT_FEAT)
    assert jnp.allclose(y_f32, y_ref, atol=1e-5, rtol=1e-5)
    assert jnp.allclose(y_full, y_ref, atol=1e-5, rtol=1e-5)
    assert jnp.allclose(y_fast, y_ref, atol=5e-2, rtol=5e-2)   # bf16 MXU tolerance

    print("KERNEL_OK")
</pallas_src>

<mosaic_0001>
module attributes {stable_mosaic.version = 11 : i64} {
  func.func @_noisy_linear_fact_kernel(%arg0: i32, %arg1: i32, %arg2: i32, %arg3: memref<8x128xbf16, #tpu.memory_space<vmem>>, %arg4: memref<128x128xbf16, #tpu.memory_space<vmem>>, %arg5: memref<128x128xbf16, #tpu.memory_space<vmem>>, %arg6: memref<128x1xbf16, #tpu.memory_space<vmem>>, %arg7: memref<1x128xbf16, #tpu.memory_space<vmem>>, %arg8: memref<1x128xf32, #tpu.memory_space<vmem>>, %arg9: memref<8x128xf32, #tpu.memory_space<vmem>>) attributes {dimension_semantics = [#tpu.dimension_semantics<parallel>, #tpu.dimension_semantics<parallel>, #tpu.dimension_semantics<arbitrary>], iteration_bounds = array<i64: 1, 1, 1>, scalar_prefetch = 0 : i64, scratch_operands = 0 : i64, tpu.core_type = #tpu.core_type<tc>, window_params = [{transform_indices = @transform_0, window_bounds = array<i64: 8, 128>}, {transform_indices = @transform_1, window_bounds = array<i64: 128, 128>}, {transform_indices = @transform_2, window_bounds = array<i64: 128, 128>}, {transform_indices = @transform_3, window_bounds = array<i64: 128, 1>}, {transform_indices = @transform_4, window_bounds = array<i64: 1, 128>}, {transform_indices = @transform_5, window_bounds = array<i64: 1, 128>}, {transform_indices = @transform_6, window_bounds = array<i64: 8, 128>}]} {
    %c0_i32 = arith.constant 0 : i32
    %0 = arith.cmpi eq, %arg2, %c0_i32 : i32
    %1 = arith.extui %0 : i1 to i32
    %c0_i32_0 = arith.constant 0 : i32
    %2 = arith.cmpi ne, %1, %c0_i32_0 : i32
    scf.if %2 {
      %cst_16 = arith.constant 0.000000e+00 : f32
      %20 = vector.broadcast %cst_16 : f32 to vector<8x128xf32>
      %c0_17 = arith.constant 0 : index
      %c0_18 = arith.constant 0 : index
      %21 = vector.load %arg9[%c0_17, %c0_18] : memref<8x128xf32, #tpu.memory_space<vmem>>, vector<8x128xf32>
      tpu.vector_store %arg9[%c0_17, %c0_18], %20 {strides = array<i32>} : memref<8x128xf32, #tpu.memory_space<vmem>>, vector<8x128xf32>,
    } else {
    }
    %c0 = arith.constant 0 : index
    %c0_1 = arith.constant 0 : index
    %3 = vector.load %arg4[%c0, %c0_1] : memref<128x128xbf16, #tpu.memory_space<vmem>>, vector<128x128xbf16>
    %c0_2 = arith.constant 0 : index
    %c0_3 = arith.constant 0 : index
    %4 = vector.load %arg5[%c0_2, %c0_3] : memref<128x128xbf16, #tpu.memory_space<vmem>>, vector<128x128xbf16>
    %c0_4 = arith.constant 0 : index
    %c0_5 = arith.constant 0 : index
    %5 = vector.load %arg6[%c0_4, %c0_5] : memref<128x1xbf16, #tpu.memory_space<vmem>>, vector<128x1xbf16>
    %c0_6 = arith.constant 0 : index
    %c0_7 = arith.constant 0 : index
    %6 = vector.load %arg7[%c0_6, %c0_7] : memref<1x128xbf16, #tpu.memory_space<vmem>>, vector<1x128xbf16>
    %7 = vector.broadcast %5 : vector<128x1xbf16> to vector<128x128xbf16>
    %8 = vector.broadcast %6 : vector<1x128xbf16> to vector<128x128xbf16>
    %9 = arith.mulf %7, %8 : vector<128x128xbf16>
    %10 = arith.mulf %4, %9 : vector<128x128xbf16>
    %11 = arith.addf %3, %10 : vector<128x128xbf16>
    %c0_8 = arith.constant 0 : index
    %c0_9 = arith.constant 0 : index
    %12 = vector.load %arg9[%c0_8, %c0_9] : memref<8x128xf32, #tpu.memory_space<vmem>>, vector<8x128xf32>
    %c0_10 = arith.constant 0 : index
    %c0_11 = arith.constant 0 : index
    %13 = vector.load %arg3[%c0_10, %c0_11] : memref<8x128xbf16, #tpu.memory_space<vmem>>, vector<8x128xbf16>
    %cst = arith.constant dense<0.000000e+00> : vector<8x128xf32>
    %14 = tpu.matmul %13, %11, %cst {dimension_numbers = #tpu.dot_dimension_numbers<[1], [1], [0], [0], [0, 0, 1, 0], [], []>} : vector<8x128xbf16>, vector<128x128xbf16>, vector<8x128xf32> -> vector<8x128xf32>
    %15 = arith.addf %12, %14 : vector<8x128xf32>
    %c0_12 = arith.constant 0 : index
    %c0_13 = arith.constant 0 : index
    %16 = vector.load %arg9[%c0_12, %c0_13] : memref<8x128xf32, #tpu.memory_space<vmem>>, vector<8x128xf32>
    tpu.vector_store %arg9[%c0_12, %c0_13], %15 {strides = array<i32>} : memref<8x128xf32, #tpu.memory_space<vmem>>, vector<8x128xf32>,
    %c0_i32_14 = arith.constant 0 : i32
    %17 = arith.cmpi eq, %arg2, %c0_i32_14 : i32
    %18 = arith.extui %17 : i1 to i32
    %c0_i32_15 = arith.constant 0 : i32
    %19 = arith.cmpi ne, %18, %c0_i32_15 : i32
    scf.if %19 {
      %c0_16 = arith.constant 0 : index
      %c0_17 = arith.constant 0 : index
      %20 = vector.load %arg9[%c0_16, %c0_17] : memref<8x128xf32, #tpu.memory_space<vmem>>, vector<8x128xf32>
      %c0_18 = arith.constant 0 : index
      %c0_19 = arith.constant 0 : index
      %21 = vector.load %arg8[%c0_18, %c0_19] : memref<1x128xf32, #tpu.memory_space<vmem>>, vector<1x128xf32>
      %22 = vector.broadcast %21 : vector<1x128xf32> to vector<8x128xf32>
      %23 = arith.addf %20, %22 : vector<8x128xf32>
      %c0_20 = arith.constant 0 : index
      %c0_21 = arith.constant 0 : index
      %24 = vector.load %arg9[%c0_20, %c0_21] : memref<8x128xf32, #tpu.memory_space<vmem>>, vector<8x128xf32>
      tpu.vector_store %arg9[%c0_20, %c0_21], %23 {strides = array<i32>} : memref<8x128xf32, #tpu.memory_space<vmem>>, vector<8x128xf32>,
    } else {
    }
    return
  }
  func.func @transform_0(%arg0: i32, %arg1: i32, %arg2: i32) -> (i32, i32) {
    %c0_i32 = arith.constant 0 : i32
    return %arg0, %arg2 : i32, i32
  }
  func.func @transform_1(%arg0: i32, %arg1: i32, %arg2: i32) -> (i32, i32) {
    %c0_i32 = arith.constant 0 : i32
    return %arg1, %arg2 : i32, i32
  }
  func.func @transform_2(%arg0: i32, %arg1: i32, %arg2: i32) -> (i32, i32) {
    %c0_i32 = arith.constant 0 : i32
    return %arg1, %arg2 : i32, i32
  }
  func.func @transform_3(%arg0: i32, %arg1: i32, %arg2: i32) -> (i32, i32) {
    %c0_i32 = arith.constant 0 : i32
    %c0_i32_0 = arith.constant 0 : i32
    return %arg1, %c0_i32 : i32, i32
  }
  func.func @transform_4(%arg0: i32, %arg1: i32, %arg2: i32) -> (i32, i32) {
    %c0_i32 = arith.constant 0 : i32
    %c0_i32_0 = arith.constant 0 : i32
    return %c0_i32, %arg2 : i32, i32
  }
  func.func @transform_5(%arg0: i32, %arg1: i32, %arg2: i32) -> (i32, i32) {
    %c0_i32 = arith.constant 0 : i32
    %c0_i32_0 = arith.constant 0 : i32
    return %c0_i32, %arg1 : i32, i32
  }
  func.func @transform_6(%arg0: i32, %arg1: i32, %arg2: i32) -> (i32, i32) {
    %c0_i32 = arith.constant 0 : i32
    return %arg0, %arg1 : i32, i32
  }
}

</mosaic_0001>

<llo_original>
// kernel: tpu_custom_call.1
$region0: #{tpu_custom_call.1}
  #allocation0 [shape = 'u32[]', space=smem, size = 0x4, offset = 0x4, fixed_abs, tag = 'smem constant byte address 0x4 - core index']
  #allocation1 [shape = 'u32[144,128]{1,0:T(1,128)}', space=vmem, size = 0x12000, scoped, tag = 'internal scratch']
  %s0 = inlined_call_operand.vmem [shape: bf16[8,128], index: 0, kind: input, shape index: {}]
  %s1 = inlined_call_operand.vmem [shape: bf16[128,128], index: 1, kind: input, shape index: {}]
  %s2 = inlined_call_operand.hbm [shape: bf16[128,128], index: 2, kind: input, shape index: {}]
  %s3 = inlined_call_operand.vmem [shape: bf16[128,1], index: 3, kind: input, shape index: {}]
  %s4 = inlined_call_operand.vmem [shape: bf16[1,128], index: 4, kind: input, shape index: {}]
  %s5 = inlined_call_operand.vmem [shape: f32[1,128], index: 5, kind: input, shape index: {}]
  %s6 = inlined_call_operand.hbm [shape: f32[8,128], index: 6, kind: output, shape index: {}]
  %s7 = sld [smem:[#allocation0]]
  $region46: #{tpu_custom_call.1} parent=0
    _
  %s9 = ssub.s32 1, %s7
  %s10 = scalar_select 0, %s9, %s7
  $region1: #{tpu_custom_call.1} parent=0
    #allocation2 [shape = 'u8[32768]{0}', space=vmem, size = 0x8000, scoped, tag = 'input window, operand 2, single buffered']
    #allocation3 [shape = 's32[1]{0}', space=sflag, size = 0x4, scoped, tag = 'scoped memory for tpu_custom_call.1']
    #allocation4 [shape = 's32[1]{0}', space=sflag, size = 0x4, scoped, tag = 'scoped memory for tpu_custom_call.1']
    #allocation5 [shape = 'u8[4096]{0}', space=vmem, size = 0x1000, scoped, tag = 'output window, operand 0, single buffered']
    %11 = vsyncpa [#allocation3], 0
    %12 = vsyncpa [#allocation4], 0
    // Predicated region
    $region2: #{tpu_custom_call.1} parent=1 // pred_check
      _
    $region3: #{tpu_custom_call.1} parent=1 // pred_check_branch
      %14 = sbr.rel (0) target = $region5
    $region4: #{tpu_custom_call.1} parent=1 // pred_region
      _
    $region5: #{tpu_custom_call.1} parent=1 // pred_fallthru
      _
    // Predicated region
    $region6: #{tpu_custom_call.1} parent=1 // pred_check
      _
    $region7: #{tpu_custom_call.1} parent=1 // pred_check_branch
      %16 = sbr.rel (0) target = $region9
    $region8: #{tpu_custom_call.1} parent=1 // pred_region
      _
    $region9: #{tpu_custom_call.1} parent=1 // pred_fallthru
      _
    // Predicated region
    $region10: #{tpu_custom_call.1} parent=1 // pred_check
      _
    $region11: #{tpu_custom_call.1} parent=1 // pred_check_branch
      %18 = sbr.rel (0) target = $region13
    $region12: #{tpu_custom_call.1} parent=1 // pred_region
      %s20 = ssub.s32 1024, 1024
      %21 = vsyncadd [#allocation3], %s20
      %s22 = sshll.u32 [#allocation2], 4
      %s23 = int_to_ptr.vmem [resolvable:$true] %s22
      %28 = dma.hbm_to_vmem [thread:$0]  %s2, 1024, %s23, [#allocation3], 64, 64, 4
    $region13: #{tpu_custom_call.1} parent=1 // pred_fallthru
      _
    // Predicated region
    $region14: #{tpu_custom_call.1} parent=1 // pred_check
      _
    $region15: #{tpu_custom_call.1} parent=1 // pred_check_branch
      %30 = sbr.rel (0) target = $region17
    $region16: #{tpu_custom_call.1} parent=1 // pred_region
      _
    $region17: #{tpu_custom_call.1} parent=1 // pred_fallthru
      _
    // Predicated region
    $region18: #{tpu_custom_call.1} parent=1 // pred_check
      _
    $region19: #{tpu_custom_call.1} parent=1 // pred_check_branch
      %32 = sbr.rel (0) target = $region21
    $region20: #{tpu_custom_call.1} parent=1 // pred_region
      _
    $region21: #{tpu_custom_call.1} parent=1 // pred_fallthru
      _
    // Predicated region
    $region22: #{tpu_custom_call.1} parent=1 // pred_check
      _
    $region23: #{tpu_custom_call.1} parent=1 // pred_check_branch
      %34 = sbr.rel (0) target = $region25
    $region24: #{tpu_custom_call.1} parent=1 // pred_region
      _
    $region25: #{tpu_custom_call.1} parent=1 // pred_fallthru
      _
    // Predicated region
    $region26: #{tpu_custom_call.1} parent=1 // pred_check
      _
    $region27: #{tpu_custom_call.1} parent=1 // pred_check_branch
      %36 = sbr.rel (0) target = $region29
    $region28: #{tpu_custom_call.1} parent=1 // pred_region
      %37 = dma.done [#allocation3], 1024
    $region29: #{tpu_custom_call.1} parent=1 // pred_fallthru
      _
    %p39 = scmp.eq.s32.totalorder 0, 0
    // Predicated region
    $region30: #{tpu_custom_call.1} parent=1 // pred_check
      %p40 = pneg %p39
    $region31: #{tpu_custom_call.1} parent=1 // pred_check_branch
      %42 = sbr.rel (%p40) target = $region33
    $region32: #{tpu_custom_call.1} parent=1 // pred_region
      %43 = vst [vmem:[#allocation5] sm:$0xff] 0.0
    $region33: #{tpu_custom_call.1} parent=1 // pred_fallthru
      _
    %v44 = vld [vmem:[%s1] sm:$0xf]
    %v45 = vld [vmem:[%s1 + $0x4] sm:$0xf]
    %v46 = vld [vmem:[%s1 + $0x8] sm:$0xf]
    %v47 = vld [vmem:[%s1 + $0xc] sm:$0xf]
    %v48 = vld [vmem:[%s1 + $0x10] sm:$0xf]
    %v49 = vld [vmem:[%s1 + $0x14] sm:$0xf]
    %v50 = vld [vmem:[%s1 + $0x18] sm:$0xf]
    %v51 = vld [vmem:[%s1 + $0x1c] sm:$0xf]
    %v52 = vld [vmem:[%s1 + $0x20] sm:$0xf]
    %v53 = vld [vmem:[%s1 + $0x24] sm:$0xf]
    %v54 = vld [vmem:[%s1 + $0x28] sm:$0xf]
    %v55 = vld [vmem:[%s1 + $0x2c] sm:$0xf]
    %v56 = vld [vmem:[%s1 + $0x30] sm:$0xf]
    %v57 = vld [vmem:[%s1 + $0x34] sm:$0xf]
    %v58 = vld [vmem:[%s1 + $0x38] sm:$0xf]
    %v59 = vld [vmem:[%s1 + $0x3c] sm:$0xf]
    %v60 = vld [vmem:[#allocation2] sm:$0xf]
    %v61 = vld [vmem:[#allocation2 + $0x4] sm:$0xf]
    %v62 = vld [vmem:[#allocation2 + $0x8] sm:$0xf]
    %v63 = vld [vmem:[#allocation2 + $0xc] sm:$0xf]
    %v64 = vld [vmem:[#allocation2 + $0x10] sm:$0xf]
    %v65 = vld [vmem:[#allocation2 + $0x14] sm:$0xf]
    %v66 = vld [vmem:[#allocation2 + $0x18] sm:$0xf]
    %v67 = vld [vmem:[#allocation2 + $0x1c] sm:$0xf]
    %v68 = vld [vmem:[#allocation2 + $0x20] sm:$0xf]
    %v69 = vld [vmem:[#allocation2 + $0x24] sm:$0xf]
    %v70 = vld [vmem:[#allocation2 + $0x28] sm:$0xf]
    %v71 = vld [vmem:[#allocation2 + $0x2c] sm:$0xf]
    %v72 = vld [vmem:[#allocation2 + $0x30] sm:$0xf]
    %v73 = vld [vmem:[#allocation2 + $0x34] sm:$0xf]
    %v74 = vld [vmem:[#allocation2 + $0x38] sm:$0xf]
    %v75 = vld [vmem:[#allocation2 + $0x3c] sm:$0xf]
    %v76 = vld [vmem:[%s3] sm:$0xf]
    %v77 = vld [vmem:[%s3 + $0x4] sm:$0xf]
    %v78 = vld [vmem:[%s3 + $0x8] sm:$0xf]
    %v79 = vld [vmem:[%s3 + $0xc] sm:$0xf]
    %v80 = vld [vmem:[%s3 + $0x10] sm:$0xf]
    %v81 = vld [vmem:[%s3 + $0x14] sm:$0xf]
    %v82 = vld [vmem:[%s3 + $0x18] sm:$0xf]
    %v83 = vld [vmem:[%s3 + $0x1c] sm:$0xf]
    %v84 = vld [vmem:[%s3 + $0x20] sm:$0xf]
    %v85 = vld [vmem:[%s3 + $0x24] sm:$0xf]
    %v86 = vld [vmem:[%s3 + $0x28] sm:$0xf]
    %v87 = vld [vmem:[%s3 + $0x2c] sm:$0xf]
    %v88 = vld [vmem:[%s3 + $0x30] sm:$0xf]
    %v89 = vld [vmem:[%s3 + $0x34] sm:$0xf]
    %v90 = vld [vmem:[%s3 + $0x38] sm:$0xf]
    %v91 = vld [vmem:[%s3 + $0x3c] sm:$0xf]
    %v92 = vld [vmem:[%s4] sm:$0x1]
    %94 = vset.pattern.permute.xlu0 0
    %95 = vperm.xlu0 %94, %v76
    %v96 = vpop.permute.xlu0 %95
    %v99 = vunpack.c.l.s4 839922192
    %v100 = vunpack.c.0.s8 %v99
    %v101 = vlaneseq
    %v102 = vshrl.u32 %v101, 7
    %v103 = vsub.s32 %v100, %v102
    %v104 = vrot.slane %v96, %v103
    %106 = vset.pattern.permute.xlu0 0
    %107 = vperm.xlu0 %106, %v77
    %v108 = vpop.permute.xlu0 %107
    %v111 = vunpack.c.l.s4 839922192
    %v112 = vunpack.c.0.s8 %v111
    %v113 = vlaneseq
    %v114 = vshrl.u32 %v113, 7
    %v115 = vsub.s32 %v112, %v114
    %v116 = vrot.slane %v108, %v115
    %118 = vset.pattern.permute.xlu0 0
    %119 = vperm.xlu0 %118, %v78
    %v120 = vpop.permute.xlu0 %119
    %v123 = vunpack.c.l.s4 839922192
    %v124 = vunpack.c.0.s8 %v123
    %v125 = vlaneseq
    %v126 = vshrl.u32 %v125, 7
    %v127 = vsub.s32 %v124, %v126
    %v128 = vrot.slane %v120, %v127
    %130 = vset.pattern.permute.xlu0 0
    %131 = vperm.xlu0 %130, %v79
    %v132 = vpop.permute.xlu0 %131
    %v135 = vunpack.c.l.s4 839922192
    %v136 = vunpack.c.0.s8 %v135
    %v137 = vlaneseq
    %v138 = vshrl.u32 %v137, 7
    %v139 = vsub.s32 %v136, %v138
    %v140 = vrot.slane %v132, %v139
    %142 = vset.pattern.permute.xlu0 0
    %143 = vperm.xlu0 %142, %v80
    %v144 = vpop.permute.xlu0 %143
    %v147 = vunpack.c.l.s4 839922192
    %v148 = vunpack.c.0.s8 %v147
    %v149 = vlaneseq
    %v150 = vshrl.u32 %v149, 7
    %v151 = vsub.s32 %v148, %v150
    %v152 = vrot.slane %v144, %v151
    %154 = vset.pattern.permute.xlu0 0
    %155 = vperm.xlu0 %154, %v81
    %v156 = vpop.permute.xlu0 %155
    %v159 = vunpack.c.l.s4 839922192
    %v160 = vunpack.c.0.s8 %v159
    %v161 = vlaneseq
    %v162 = vshrl.u32 %v161, 7
    %v163 = vsub.s32 %v160, %v162
    %v164 = vrot.slane %v156, %v163
    %166 = vset.pattern.permute.xlu0 0
    %167 = vperm.xlu0 %166, %v82
    %v168 = vpop.permute.xlu0 %167
    %v171 = vunpack.c.l.s4 839922192
    %v172 = vunpack.c.0.s8 %v171
    %v173 = vlaneseq
    %v174 = vshrl.u32 %v173, 7
    %v175 = vsub.s32 %v172, %v174
    %v176 = vrot.slane %v168, %v175
    %178 = vset.pattern.permute.xlu0 0
    %179 = vperm.xlu0 %178, %v83
    %v180 = vpop.permute.xlu0 %179
    %v183 = vunpack.c.l.s4 839922192
    %v184 = vunpack.c.0.s8 %v183
    %v185 = vlaneseq
    %v186 = vshrl.u32 %v185, 7
    %v187 = vsub.s32 %v184, %v186
    %v188 = vrot.slane %v180, %v187
    %190 = vset.pattern.permute.xlu0 0
    %191 = vperm.xlu0 %190, %v84
    %v192 = vpop.permute.xlu0 %191
    %v195 = vunpack.c.l.s4 839922192
    %v196 = vunpack.c.0.s8 %v195
    %v197 = vlaneseq
    %v198 = vshrl.u32 %v197, 7
    %v199 = vsub.s32 %v196, %v198
    %v200 = vrot.slane %v192, %v199
    %202 = vset.pattern.permute.xlu0 0
    %203 = vperm.xlu0 %202, %v85
    %v204 = vpop.permute.xlu0 %203
    %v207 = vunpack.c.l.s4 839922192
    %v208 = vunpack.c.0.s8 %v207
    %v209 = vlaneseq
    %v210 = vshrl.u32 %v209, 7
    %v211 = vsub.s32 %v208, %v210
    %v212 = vrot.slane %v204, %v211
    %214 = vset.pattern.permute.xlu0 0
    %215 = vperm.xlu0 %214, %v86
    %v216 = vpop.permute.xlu0 %215
    %v219 = vunpack.c.l.s4 839922192
    %v220 = vunpack.c.0.s8 %v219
    %v221 = vlaneseq
    %v222 = vshrl.u32 %v221, 7
    %v223 = vsub.s32 %v220, %v222
    %v224 = vrot.slane %v216, %v223
    %226 = vset.pattern.permute.xlu0 0
    %227 = vperm.xlu0 %226, %v87
    %v228 = vpop.permute.xlu0 %227
    %v231 = vunpack.c.l.s4 839922192
    %v232 = vunpack.c.0.s8 %v231
    %v233 = vlaneseq
    %v234 = vshrl.u32 %v233, 7
    %v235 = vsub.s32 %v232, %v234
    %v236 = vrot.slane %v228, %v235
    %238 = vset.pattern.permute.xlu0 0
    %239 = vperm.xlu0 %238, %v88
    %v240 = vpop.permute.xlu0 %239
    %v243 = vunpack.c.l.s4 839922192
    %v244 = vunpack.c.0.s8 %v243
    %v245 = vlaneseq
    %v246 = vshrl.u32 %v245, 7
    %v247 = vsub.s32 %v244, %v246
    %v248 = vrot.slane %v240, %v247
    %250 = vset.pattern.permute.xlu0 0
    %251 = vperm.xlu0 %250, %v89
    %v252 = vpop.permute.xlu0 %251
    %v255 = vunpack.c.l.s4 839922192
    %v256 = vunpack.c.0.s8 %v255
    %v257 = vlaneseq
    %v258 = vshrl.u32 %v257, 7
    %v259 = vsub.s32 %v256, %v258
    %v260 = vrot.slane %v252, %v259
    %262 = vset.pattern.permute.xlu0 0
    %263 = vperm.xlu0 %262, %v90
    %v264 = vpop.permute.xlu0 %263
    %v267 = vunpack.c.l.s4 839922192
    %v268 = vunpack.c.0.s8 %v267
    %v269 = vlaneseq
    %v270 = vshrl.u32 %v269, 7
    %v271 = vsub.s32 %v268, %v270
    %v272 = vrot.slane %v264, %v271
    %274 = vset.pattern.permute.xlu0 0
    %275 = vperm.xlu0 %274, %v91
    %v276 = vpop.permute.xlu0 %275
    %v279 = vunpack.c.l.s4 839922192
    %v280 = vunpack.c.0.s8 %v279
    %v281 = vlaneseq
    %v282 = vshrl.u32 %v281, 7
    %v283 = vsub.s32 %v280, %v282
    %v284 = vrot.slane %v276, %v283
    %v286 = vpack.i.b16 %v92, %v92
    %v288 = vlaneseq
    %v289 = vshrl.u32 %v288, 7
    %v290 = vsub.s32 0, %v289
    %v291 = vrot.slane %v286, %v290
    %v293 = vunpack.c.l.b16 %v291
    %v294 = vpack.c.b16 %v293, %v293
    %v296 = vmul.bf16 %v104, %v294
    %v297 = vmul.bf16 %v116, %v294
    %v298 = vmul.bf16 %v128, %v294
    %v299 = vmul.bf16 %v140, %v294
    %v300 = vmul.bf16 %v152, %v294
    %v301 = vmul.bf16 %v164, %v294
    %v302 = vmul.bf16 %v176, %v294
    %v303 = vmul.bf16 %v188, %v294
    %v304 = vmul.bf16 %v200, %v294
    %v305 = vmul.bf16 %v212, %v294
    %v306 = vmul.bf16 %v224, %v294
    %v307 = vmul.bf16 %v236, %v294
    %v308 = vmul.bf16 %v248, %v294
    %v309 = vmul.bf16 %v260, %v294
    %v310 = vmul.bf16 %v272, %v294
    %v311 = vmul.bf16 %v284, %v294
    %v312 = vmul.bf16 %v60, %v296
    %v313 = vmul.bf16 %v61, %v297
    %v314 = vmul.bf16 %v62, %v298
    %v315 = vmul.bf16 %v63, %v299
    %v316 = vmul.bf16 %v64, %v300
    %v317 = vmul.bf16 %v65, %v301
    %v318 = vmul.bf16 %v66, %v302
    %v319 = vmul.bf16 %v67, %v303
    %v320 = vmul.bf16 %v68, %v304
    %v321 = vmul.bf16 %v69, %v305
    %v322 = vmul.bf16 %v70, %v306
    %v323 = vmul.bf16 %v71, %v307
    %v324 = vmul.bf16 %v72, %v308
    %v325 = vmul.bf16 %v73, %v309
    %v326 = vmul.bf16 %v74, %v310
    %v327 = vmul.bf16 %v75, %v311
    %v328 = vadd.bf16 %v44, %v312
    %v329 = vadd.bf16 %v45, %v313
    %v330 = vadd.bf16 %v46, %v314
    %v331 = vadd.bf16 %v47, %v315
    %v332 = vadd.bf16 %v48, %v316
    %v333 = vadd.bf16 %v49, %v317
    %v334 = vadd.bf16 %v50, %v318
    %v335 = vadd.bf16 %v51, %v319
    %v336 = vadd.bf16 %v52, %v320
    %v337 = vadd.bf16 %v53, %v321
    %v338 = vadd.bf16 %v54, %v322
    %v339 = vadd.bf16 %v55, %v323
    %v340 = vadd.bf16 %v56, %v324
    %v341 = vadd.bf16 %v57, %v325
    %v342 = vadd.bf16 %v58, %v326
    %v343 = vadd.bf16 %v59, %v327
    %v344 = vld [vmem:[#allocation5] sm:$0xff]
    %v345 = vld [vmem:[%s0] sm:$0xf]
    %v362 = vunpack.c.l.b16 %v328
    %v363 = vunpack.c.l.b16 %v329
    %v364 = vunpack.c.l.b16 %v330
    %v365 = vunpack.c.l.b16 %v331
    %v366 = vunpack.c.l.b16 %v332
    %v367 = vunpack.c.l.b16 %v333
    %v368 = vunpack.c.l.b16 %v334
    %v369 = vunpack.c.l.b16 %v335
    %v370 = vunpack.c.l.b16 %v336
    %v371 = vunpack.c.l.b16 %v337
    %v372 = vunpack.c.l.b16 %v338
    %v373 = vunpack.c.l.b16 %v339
    %v374 = vunpack.c.l.b16 %v340
    %v375 = vunpack.c.l.b16 %v341
    %v376 = vunpack.c.l.b16 %v342
    %v377 = vunpack.c.l.b16 %v343
    %v378 = vpack.c.b16 %v363, %v362
    %v379 = vpack.c.b16 %v365, %v364
    %v380 = vpack.c.b16 %v367, %v366
    %v381 = vpack.c.b16 %v369, %v368
    %v382 = vpack.c.b16 %v371, %v370
    %v383 = vpack.c.b16 %v373, %v372
    %v384 = vpack.c.b16 %v375, %v374
    %v385 = vpack.c.b16 %v377, %v376
    %394 = vmatprep.subr.bf16.mxu0 0
    %395 = vmatpush1.bf16.xpose.msra.mxu0 %v378
    %396 = vmatprep.subr.bf16.mxu0 0
    %397 = vmatpush1.bf16.xpose.msra.mxu0 %v379
    %398 = vmatprep.subr.bf16.mxu0 0
    %399 = vmatpush1.bf16.xpose.msra.mxu0 %v380
    %400 = vmatprep.subr.bf16.mxu0 0
    %401 = vmatpush1.bf16.xpose.msra.mxu0 %v381
    %402 = vmatprep.subr.bf16.mxu0 0
    %403 = vmatpush1.bf16.xpose.msra.mxu0 %v382
    %404 = vmatprep.subr.bf16.mxu0 0
    %405 = vmatpush1.bf16.xpose.msra.mxu0 %v383
    %406 = vmatprep.subr.bf16.mxu0 0
    %407 = vmatpush1.bf16.xpose.msra.mxu0 %v384
    %408 = vmatprep.subr.bf16.mxu0 0
    %409 = vmatpush1.bf16.xpose.msra.mxu0 %v385
    %410 = vmatprep.subr.bf16.mxu0 0
    %411 = vmatpush1.bf16.xpose.msra.mxu0 0
    %412 = vmatprep.subr.bf16.mxu0 0
    %413 = vmatpush1.bf16.xpose.msra.mxu0 0
    %414 = vmatprep.subr.bf16.mxu0 0
    %415 = vmatpush1.bf16.xpose.msra.mxu0 0
    %416 = vmatprep.subr.bf16.mxu0 0
    %417 = vmatpush1.bf16.xpose.msra.mxu0 0
    %418 = vmatprep.subr.bf16.mxu0 0
    %419 = vmatpush1.bf16.xpose.msra.mxu0 0
    %420 = vmatprep.subr.bf16.mxu0 0
    %421 = vmatpush1.bf16.xpose.msra.mxu0 0
    %422 = vmatprep.subr.bf16.mxu0 0
    %423 = vmatpush1.bf16.xpose.msra.mxu0 0
    %424 = vmatprep.subr.bf16.mxu0 0
    %425 = vmatpush1.bf16.xpose.msra.mxu0 0
    %426 = vmatprep.mubr.bf16.mxu0 0
    %427 = vmatmul.mubr.bf16.gmra.mrb[0].mxu0 %v345
    %v428 = vpop.f32.mrb[0].mxu0
    %v429 = vadd.f32 0.0, %v428
    %v430 = vpop.f32.mrb[0].mxu0
    %v431 = vpop.f32.mrb[0].mxu0
    %v432 = vpop.f32.mrb[0].mxu0
    %433 = vdwg.mxu0
    %v434 = vadd.f32 %v344, %v429
    %435 = vst [vmem:[#allocation5] sm:$0xff] %v434
    // Predicated region
    $region34: #{tpu_custom_call.1} parent=1 // pred_check
      %p436 = pneg %p39
    $region35: #{tpu_custom_call.1} parent=1 // pred_check_branch
      %438 = sbr.rel (%p436) target = $region37
    $region36: #{tpu_custom_call.1} parent=1 // pred_region
      %v439 = vld [vmem:[#allocation5] sm:$0xff]
      %v440 = vld [vmem:[%s5] sm:$0x1]
      %v442 = vlaneseq
      %v443 = vshrl.u32 %v442, 7
      %v444 = vsub.s32 0, %v443
      %v445 = vrot.slane %v440, %v444
      %v447 = vadd.f32 %v439, %v445
      %448 = vst [vmem:[#allocation5] sm:$0xff] %v447
    $region37: #{tpu_custom_call.1} parent=1 // pred_fallthru
      _
    // Predicated region
    $region38: #{tpu_custom_call.1} parent=1 // pred_check
      _
    $region39: #{tpu_custom_call.1} parent=1 // pred_check_branch
      %450 = sbr.rel (0) target = $region41
    $region40: #{tpu_custom_call.1} parent=1 // pred_region
      %s452 = ssub.s32 128, 128
      %453 = vsyncadd [#allocation4], %s452
      %s455 = sshll.u32 [#allocation5], 4
      %s456 = int_to_ptr.vmem [resolvable:$true] %s455
      %458 = dma.vmem_to_hbm [thread:$0]  %s456, 128, %s6, [#allocation4]
    $region41: #{tpu_custom_call.1} parent=1 // pred_fallthru
      _
    // Predicated region
    $region42: #{tpu_custom_call.1} parent=1 // pred_check
      _
    $region43: #{tpu_custom_call.1} parent=1 // pred_check_branch
      %460 = sbr.rel (0) target = $region45
    $region44: #{tpu_custom_call.1} parent=1 // pred_region
      %461 = dma.done [#allocation4], 128
    $region45: #{tpu_custom_call.1} parent=1 // pred_fallthru
      _
    %462 = vsyncpa [#allocation3], 1
    %463 = vsyncpa [#allocation4], 1

</llo_original>
